<compile_context>
chip_gen: v7x
topology: tpu7x:2x2x1
jax: 0.10.0
libtpu: 0.0.40
codegen_flags: <defaults>
</compile_context>

<pallas_src>
import jax
import jax.numpy as jnp
import numpy as np
from jax.experimental import pallas as pl
from jax.experimental.pallas import tpu as pltpu


# ---------------------------------------------------------------------------
# Kernel: fused 1x1 conv (channel contraction) + folded BN affine + ReLU
# ---------------------------------------------------------------------------
_VPU_OUTER_PRODUCT_MAX_CIN = 16  # tiny K: skip the MXU, use VALU slots instead


def _conv1x1_bn_relu_kernel(x_ref, w_ref, shift_ref, o_ref):
    # x_ref:     (Bn, Cin, HW)   -- Bn batch elements, NCHW flattened
    # w_ref:     (Cout, Cin)     -- conv weight with BN scale folded in
    # shift_ref: (Cout, 1)       -- folded bias + BN shift (per output channel)
    # o_ref:     (Bn, Cout, HW)
    bn, cin, _ = x_ref.shape
    w = w_ref[...]
    shift = shift_ref[...]
    use_vpu = cin <= _VPU_OUTER_PRODUCT_MAX_CIN

    for n in range(bn):  # static unroll; Bn is 1 or 2 here
        x_n = x_ref[n]   # (Cin, HW)
        if use_vpu:
            # Unrolled outer-product accumulation on the VPU: pure f32, no MXU
            # push/pop latency for a K=4 contraction.
            acc = w[:, 0:1] * x_n[0:1, :]                     # (Cout, HW)
            for c in range(1, cin):
                acc = acc + w[:, c:c + 1] * x_n[c:c + 1, :]
        else:
            acc = jnp.dot(w, x_n, preferred_element_type=jnp.float32)
        o_ref[n] = jnp.maximum(acc + shift, 0.0)              # ReLU


# ---------------------------------------------------------------------------
# One-time (init) parameter folding: conv bias + eval-mode BN -> scale/shift
# ---------------------------------------------------------------------------
def fold_conv1x1_bn_params(params, eps=1e-5):
    Cout, Cin = params["weight"].shape[:2]
    w = params["weight"].reshape(Cout, Cin).astype(jnp.float32)
    scale = (params["bn_gamma"] / jnp.sqrt(params["bn_var"] + eps)).astype(jnp.float32)
    w_folded = w * scale[:, None]                                        # (Cout, Cin)
    shift = (params["bias"] - params["bn_mean"]) * scale + params["bn_beta"]
    shift = shift.reshape(Cout, 1).astype(jnp.float32)                   # (Cout, 1)
    return w_folded, shift


def _tensorcores_per_chip():
    # v7x has 2 TensorCores per chip; v5e/v6e have 1.  Conservative fallback: 1.
    try:
        kind = jax.devices()[0].device_kind.lower()
    except Exception:
        return 1
    return 2 if "v7" in kind else 1


# ---------------------------------------------------------------------------
# Wrapper (NCHW in / NCHW out, like the PyTorch module)
# ---------------------------------------------------------------------------
def conv1x1_forward(x_nchw, w_folded, shift, *, batch_blocks=None):
    x_nchw = x_nchw.astype(jnp.float32)          # no-op if already f32 (fused by jit)
    N, Cin, H, W = x_nchw.shape
    Cout = w_folded.shape[0]
    HW = H * W

    if batch_blocks is None:
        # v5e/v6e (1 TC): collapse to a single grid step.
        # v7x (2 TCs): keep >=2 parallel blocks so both cores get work.
        batch_blocks = min(N, _tensorcores_per_chip())
    batch_blocks = max(1, min(int(batch_blocks), N))
    while N % batch_blocks:                      # keep an even batch split
        batch_blocks -= 1
    bn = N // batch_blocks                       # batch elements per grid step

    x_flat = x_nchw.reshape(N, Cin, HW)          # view-only reshape, stays NCHW

    out_flat = pl.pallas_call(
        _conv1x1_bn_relu_kernel,
        out_shape=jax.ShapeDtypeStruct((N, Cout, HW), jnp.float32),
        grid=(batch_blocks,),
        in_specs=[
            pl.BlockSpec((bn, Cin, HW), lambda i: (i, 0, 0)),
            pl.BlockSpec((Cout, Cin), lambda i: (0, 0)),     # resident weight
            pl.BlockSpec((Cout, 1), lambda i: (0, 0)),       # resident shift
        ],
        out_specs=pl.BlockSpec((bn, Cout, HW), lambda i: (i, 0, 0)),
        compiler_params=pltpu.CompilerParams(
            dimension_semantics=("parallel",)),
    )(x_flat, w_folded, shift)

    return out_flat.reshape(N, Cout, H, W)


# ---------------------------------------------------------------------------
# Pure-JAX reference (same semantics) for a numerical sanity check
# ---------------------------------------------------------------------------
def conv1x1_reference(x_nchw, params, eps=1e-5):
    Cout, Cin = params["weight"].shape[:2]
    w = params["weight"].reshape(Cout, Cin)
    y = jnp.einsum("nchw,oc->nohw", x_nchw, w) + params["bias"].reshape(1, -1, 1, 1)
    mean = params["bn_mean"].reshape(1, -1, 1, 1)
    var = params["bn_var"].reshape(1, -1, 1, 1)
    gamma = params["bn_gamma"].reshape(1, -1, 1, 1)
    beta = params["bn_beta"].reshape(1, -1, 1, 1)
    y = (y - mean) / jnp.sqrt(var + eps) * gamma + beta
    return jnp.maximum(y, 0.0)


# ---------------------------------------------------------------------------
if __name__ == "__main__":
    # Small shapes consistent with Conv1x1(inplanes=4, planes=8)
    N, Cin, Cout, H, W = 2, 4, 8, 16, 16

    key = jax.random.PRNGKey(0)
    k_x, k_w, k_b, k_g, k_be, k_m, k_v = jax.random.split(key, 7)

    x = jax.random.normal(k_x, (N, Cin, H, W), jnp.float32)

    # PyTorch-layout 1x1 conv weight (Cout, Cin, 1, 1) + bias, plus non-trivial
    # BatchNorm running stats / affine params to exercise the folding.
    params = {
        "weight": jax.random.normal(k_w, (Cout, Cin, 1, 1), jnp.float32) * 0.2,
        "bias": jax.random.normal(k_b, (Cout,), jnp.float32) * 0.1,
        "bn_gamma": 1.0 + 0.1 * jax.random.normal(k_g, (Cout,), jnp.float32),
        "bn_beta": 0.1 * jax.random.normal(k_be, (Cout,), jnp.float32),
        "bn_mean": 0.1 * jax.random.normal(k_m, (Cout,), jnp.float32),
        "bn_var": 1.0 + 0.2 * jnp.abs(jax.random.normal(k_v, (Cout,), jnp.float32)),
    }

    # One-time init-path folding (hoisted out of the per-call path).
    w_folded, shift = fold_conv1x1_bn_params(params)
    w_folded = jax.block_until_ready(w_folded)
    shift = jax.block_until_ready(shift)

    fwd = jax.jit(conv1x1_forward)
    out = jax.block_until_ready(fwd(x, w_folded, shift))
    assert out.shape == (N, Cout, H, W)

    ref = jax.block_until_ready(conv1x1_reference(x, params))
    np.testing.assert_allclose(np.asarray(out), np.asarray(ref),
                               rtol=1e-4, atol=1e-4)

    print("KERNEL_OK")
</pallas_src>

<mosaic_0001>
module attributes {stable_mosaic.version = 11 : i64} {
  func.func @_conv1x1_bn_relu_kernel(%arg0: i32, %arg1: memref<2x4x256xf32, #tpu.memory_space<vmem>>, %arg2: memref<8x4xf32, #tpu.memory_space<vmem>>, %arg3: memref<8x1xf32, #tpu.memory_space<vmem>>, %arg4: memref<2x8x256xf32, #tpu.memory_space<vmem>>) attributes {dimension_semantics = [#tpu.dimension_semantics<parallel>], iteration_bounds = array<i64: 1>, scalar_prefetch = 0 : i64, scratch_operands = 0 : i64, tpu.core_type = #tpu.core_type<tc>, window_params = [{transform_indices = @transform_0, window_bounds = array<i64: 2, 4, 256>}, {pipeline_mode = #tpu.pipeline_mode<synchronous>, transform_indices = @transform_1, window_bounds = array<i64: 8, 4>}, {pipeline_mode = #tpu.pipeline_mode<synchronous>, transform_indices = @transform_2, window_bounds = array<i64: 8, 1>}, {transform_indices = @transform_3, window_bounds = array<i64: 2, 8, 256>}]} {
    %c0 = arith.constant 0 : index
    %c0_0 = arith.constant 0 : index
    %0 = vector.load %arg2[%c0, %c0_0] : memref<8x4xf32, #tpu.memory_space<vmem>>, vector<8x4xf32>
    %c0_1 = arith.constant 0 : index
    %c0_2 = arith.constant 0 : index
    %1 = vector.load %arg3[%c0_1, %c0_2] : memref<8x1xf32, #tpu.memory_space<vmem>>, vector<8x1xf32>
    %c0_3 = arith.constant 0 : index
    %c0_4 = arith.constant 0 : index
    %c0_5 = arith.constant 0 : index
    %2 = vector.load %arg1[%c0_3, %c0_4, %c0_5] : memref<2x4x256xf32, #tpu.memory_space<vmem>>, vector<1x4x256xf32>
    %3 = vector.shape_cast %2 : vector<1x4x256xf32> to vector<4x256xf32>
    %4 = vector.extract_strided_slice %0 {offsets = [0, 0], sizes = [8, 1], strides = [1, 1]} : vector<8x4xf32> to vector<8x1xf32>
    %5 = vector.extract_strided_slice %3 {offsets = [0, 0], sizes = [1, 256], strides = [1, 1]} : vector<4x256xf32> to vector<1x256xf32>
    %6 = vector.broadcast %4 : vector<8x1xf32> to vector<8x256xf32>
    %7 = vector.broadcast %5 : vector<1x256xf32> to vector<8x256xf32>
    %8 = arith.mulf %6, %7 : vector<8x256xf32>
    %9 = vector.extract_strided_slice %0 {offsets = [0, 1], sizes = [8, 1], strides = [1, 1]} : vector<8x4xf32> to vector<8x1xf32>
    %10 = vector.extract_strided_slice %3 {offsets = [1, 0], sizes = [1, 256], strides = [1, 1]} : vector<4x256xf32> to vector<1x256xf32>
    %11 = vector.broadcast %9 : vector<8x1xf32> to vector<8x256xf32>
    %12 = vector.broadcast %10 : vector<1x256xf32> to vector<8x256xf32>
    %13 = arith.mulf %11, %12 : vector<8x256xf32>
    %14 = arith.addf %8, %13 : vector<8x256xf32>
    %15 = vector.extract_strided_slice %0 {offsets = [0, 2], sizes = [8, 1], strides = [1, 1]} : vector<8x4xf32> to vector<8x1xf32>
    %16 = vector.extract_strided_slice %3 {offsets = [2, 0], sizes = [1, 256], strides = [1, 1]} : vector<4x256xf32> to vector<1x256xf32>
    %17 = vector.broadcast %15 : vector<8x1xf32> to vector<8x256xf32>
    %18 = vector.broadcast %16 : vector<1x256xf32> to vector<8x256xf32>
    %19 = arith.mulf %17, %18 : vector<8x256xf32>
    %20 = arith.addf %14, %19 : vector<8x256xf32>
    %21 = vector.extract_strided_slice %0 {offsets = [0, 3], sizes = [8, 1], strides = [1, 1]} : vector<8x4xf32> to vector<8x1xf32>
    %22 = vector.extract_strided_slice %3 {offsets = [3, 0], sizes = [1, 256], strides = [1, 1]} : vector<4x256xf32> to vector<1x256xf32>
    %23 = vector.broadcast %21 : vector<8x1xf32> to vector<8x256xf32>
    %24 = vector.broadcast %22 : vector<1x256xf32> to vector<8x256xf32>
    %25 = arith.mulf %23, %24 : vector<8x256xf32>
    %26 = arith.addf %20, %25 : vector<8x256xf32>
    %27 = vector.broadcast %1 : vector<8x1xf32> to vector<8x256xf32>
    %28 = arith.addf %26, %27 : vector<8x256xf32>
    %cst = arith.constant 0.000000e+00 : f32
    %29 = vector.broadcast %cst : f32 to vector<8x256xf32>
    %30 = arith.maximumf %28, %29 : vector<8x256xf32>
    %c0_6 = arith.constant 0 : index
    %c0_7 = arith.constant 0 : index
    %c0_8 = arith.constant 0 : index
    %31 = vector.load %arg4[%c0_6, %c0_7, %c0_8] : memref<2x8x256xf32, #tpu.memory_space<vmem>>, vector<1x8x256xf32>
    %32 = vector.shape_cast %31 : vector<1x8x256xf32> to vector<8x256xf32>
    %33 = vector.shape_cast %30 : vector<8x256xf32> to vector<1x8x256xf32>
    tpu.vector_store %arg4[%c0_6, %c0_7, %c0_8], %33 {strides = array<i32>} : memref<2x8x256xf32, #tpu.memory_space<vmem>>, vector<1x8x256xf32>,
    %c1 = arith.constant 1 : index
    %c0_9 = arith.constant 0 : index
    %c0_10 = arith.constant 0 : index
    %34 = vector.load %arg1[%c1, %c0_9, %c0_10] : memref<2x4x256xf32, #tpu.memory_space<vmem>>, vector<1x4x256xf32>
    %35 = vector.shape_cast %34 : vector<1x4x256xf32> to vector<4x256xf32>
    %36 = vector.extract_strided_slice %0 {offsets = [0, 0], sizes = [8, 1], strides = [1, 1]} : vector<8x4xf32> to vector<8x1xf32>
    %37 = vector.extract_strided_slice %35 {offsets = [0, 0], sizes = [1, 256], strides = [1, 1]} : vector<4x256xf32> to vector<1x256xf32>
    %38 = vector.broadcast %36 : vector<8x1xf32> to vector<8x256xf32>
    %39 = vector.broadcast %37 : vector<1x256xf32> to vector<8x256xf32>
    %40 = arith.mulf %38, %39 : vector<8x256xf32>
    %41 = vector.extract_strided_slice %0 {offsets = [0, 1], sizes = [8, 1], strides = [1, 1]} : vector<8x4xf32> to vector<8x1xf32>
    %42 = vector.extract_strided_slice %35 {offsets = [1, 0], sizes = [1, 256], strides = [1, 1]} : vector<4x256xf32> to vector<1x256xf32>
    %43 = vector.broadcast %41 : vector<8x1xf32> to vector<8x256xf32>
    %44 = vector.broadcast %42 : vector<1x256xf32> to vector<8x256xf32>
    %45 = arith.mulf %43, %44 : vector<8x256xf32>
    %46 = arith.addf %40, %45 : vector<8x256xf32>
    %47 = vector.extract_strided_slice %0 {offsets = [0, 2], sizes = [8, 1], strides = [1, 1]} : vector<8x4xf32> to vector<8x1xf32>
    %48 = vector.extract_strided_slice %35 {offsets = [2, 0], sizes = [1, 256], strides = [1, 1]} : vector<4x256xf32> to vector<1x256xf32>
    %49 = vector.broadcast %47 : vector<8x1xf32> to vector<8x256xf32>
    %50 = vector.broadcast %48 : vector<1x256xf32> to vector<8x256xf32>
    %51 = arith.mulf %49, %50 : vector<8x256xf32>
    %52 = arith.addf %46, %51 : vector<8x256xf32>
    %53 = vector.extract_strided_slice %0 {offsets = [0, 3], sizes = [8, 1], strides = [1, 1]} : vector<8x4xf32> to vector<8x1xf32>
    %54 = vector.extract_strided_slice %35 {offsets = [3, 0], sizes = [1, 256], strides = [1, 1]} : vector<4x256xf32> to vector<1x256xf32>
    %55 = vector.broadcast %53 : vector<8x1xf32> to vector<8x256xf32>
    %56 = vector.broadcast %54 : vector<1x256xf32> to vector<8x256xf32>
    %57 = arith.mulf %55, %56 : vector<8x256xf32>
    %58 = arith.addf %52, %57 : vector<8x256xf32>
    %59 = vector.broadcast %1 : vector<8x1xf32> to vector<8x256xf32>
    %60 = arith.addf %58, %59 : vector<8x256xf32>
    %cst_11 = arith.constant 0.000000e+00 : f32
    %61 = vector.broadcast %cst_11 : f32 to vector<8x256xf32>
    %62 = arith.maximumf %60, %61 : vector<8x256xf32>
    %c1_12 = arith.constant 1 : index
    %c0_13 = arith.constant 0 : index
    %c0_14 = arith.constant 0 : index
    %63 = vector.load %arg4[%c1_12, %c0_13, %c0_14] : memref<2x8x256xf32, #tpu.memory_space<vmem>>, vector<1x8x256xf32>
    %64 = vector.shape_cast %63 : vector<1x8x256xf32> to vector<8x256xf32>
    %65 = vector.shape_cast %62 : vector<8x256xf32> to vector<1x8x256xf32>
    tpu.vector_store %arg4[%c1_12, %c0_13, %c0_14], %65 {strides = array<i32>} : memref<2x8x256xf32, #tpu.memory_space<vmem>>, vector<1x8x256xf32>,
    return
  }
  func.func @transform_0(%arg0: i32) -> (i32, i32, i32) {
    %c0_i32 = arith.constant 0 : i32
    %c0_i32_0 = arith.constant 0 : i32
    %c0_i32_1 = arith.constant 0 : i32
    return %arg0, %c0_i32, %c0_i32_0 : i32, i32, i32
  }
  func.func @transform_1(%arg0: i32) -> (i32, i32) {
    %c0_i32 = arith.constant 0 : i32
    %c0_i32_0 = arith.constant 0 : i32
    %c0_i32_1 = arith.constant 0 : i32
    return %c0_i32, %c0_i32_0 : i32, i32
  }
  func.func @transform_2(%arg0: i32) -> (i32, i32) {
    %c0_i32 = arith.constant 0 : i32
    %c0_i32_0 = arith.constant 0 : i32
    %c0_i32_1 = arith.constant 0 : i32
    return %c0_i32, %c0_i32_0 : i32, i32
  }
  func.func @transform_3(%arg0: i32) -> (i32, i32, i32) {
    %c0_i32 = arith.constant 0 : i32
    %c0_i32_0 = arith.constant 0 : i32
    %c0_i32_1 = arith.constant 0 : i32
    return %arg0, %c0_i32, %c0_i32_0 : i32, i32, i32
  }
}

</mosaic_0001>

<llo_original>
// kernel: conv1x1_forward.1
$region0: #{conv1x1_forward.1}
  #allocation0 [shape = 'u32[]', space=smem, size = 0x4, offset = 0x4, fixed_abs, tag = 'smem constant byte address 0x4 - core index']
  #allocation1 [shape = 'u32[144,128]{1,0:T(1,128)}', space=vmem, size = 0x12000, scoped, tag = 'internal scratch']
  %s0 = inlined_call_operand.vmem [shape: f32[2,4,256], index: 0, kind: input, shape index: {}]
  %s1 = inlined_call_operand.vmem [shape: f32[8,4], index: 1, kind: input, shape index: {}]
  %s2 = inlined_call_operand.vmem [shape: f32[8,1], index: 2, kind: input, shape index: {}]
  %s3 = inlined_call_operand.vmem [shape: f32[2,8,256], index: 3, kind: output, shape index: {}]
  %s4 = sld [smem:[#allocation0]]
  $region22: #{conv1x1_forward.1} parent=0
    _
  %s6 = ssub.s32 1, %s4
  %s7 = scalar_select 0, %s6, %s4
  // Predicated region
  $region2: #{conv1x1_forward.1} parent=0 // pred_check
    _
  $region3: #{conv1x1_forward.1} parent=0 // pred_check_branch
    %9 = sbr.rel (0) target = $region5
  $region4: #{conv1x1_forward.1} parent=0 // pred_region
    _
  $region5: #{conv1x1_forward.1} parent=0 // pred_fallthru
    _
  // Predicated region
  $region6: #{conv1x1_forward.1} parent=0 // pred_check
    _
  $region7: #{conv1x1_forward.1} parent=0 // pred_check_branch
    %11 = sbr.rel (0) target = $region9
  $region8: #{conv1x1_forward.1} parent=0 // pred_region
    _
  $region9: #{conv1x1_forward.1} parent=0 // pred_fallthru
    _
  // Predicated region
  $region10: #{conv1x1_forward.1} parent=0 // pred_check
    _
  $region11: #{conv1x1_forward.1} parent=0 // pred_check_branch
    %13 = sbr.rel (0) target = $region13
  $region12: #{conv1x1_forward.1} parent=0 // pred_region
    _
  $region13: #{conv1x1_forward.1} parent=0 // pred_fallthru
    _
  %v14 = vld [vmem:[%s1] sm:$0xff]
  %v15 = vld [vmem:[%s2] sm:$0xff]
  %v16 = vld [vmem:[%s0] sm:$0xff]
  %18 = vset.pattern.permute.xlu0 0
  %19 = vperm.xlu0 %18, %v14
  %v20 = vpop.permute.xlu0 %19
  %v23 = vlaneseq
  %v24 = vshrl.u32 %v23, 7
  %v25 = vsub.s32 0, %v24
  %v26 = vrot.slane %v16, %v25
  %v27 = vlaneseq
  %v28 = vshrl.u32 %v27, 7
  %v29 = vsub.s32 4, %v28
  %v30 = vrot.slane %v16, %v29
  %v33 = vlaneseq
  %v34 = vshrl.u32 %v33, 7
  %v35 = vsub.s32 0, %v34
  %v36 = vrot.slane %v26, %v35
  %v37 = vlaneseq
  %v38 = vshrl.u32 %v37, 7
  %v39 = vsub.s32 0, %v38
  %v40 = vrot.slane %v30, %v39
  %v41 = vmul.f32 %v20, %v36
  %v42 = vmul.f32 %v20, %v40
  %43 = vset.pattern.permute.xlu0 1
  %44 = vperm.xlu0 %43, %v14
  %v45 = vpop.permute.xlu0 %44
  %v47 = vlaneseq
  %v48 = vshrl.u32 %v47, 7
  %v49 = vsub.s32 1, %v48
  %v50 = vrot.slane %v16, %v49
  %v51 = vlaneseq
  %v52 = vshrl.u32 %v51, 7
  %v53 = vsub.s32 5, %v52
  %v54 = vrot.slane %v16, %v53
  %v57 = vlaneseq
  %v58 = vshrl.u32 %v57, 7
  %v59 = vsub.s32 1, %v58
  %v60 = vrot.slane %v50, %v59
  %v61 = vlaneseq
  %v62 = vshrl.u32 %v61, 7
  %v63 = vsub.s32 1, %v62
  %v64 = vrot.slane %v54, %v63
  %v65 = vmul.f32 %v45, %v60
  %v66 = vmul.f32 %v45, %v64
  %v67 = vadd.f32 %v41, %v65
  %v68 = vadd.f32 %v42, %v66
  %69 = vset.pattern.permute.xlu0 2
  %70 = vperm.xlu0 %69, %v14
  %v71 = vpop.permute.xlu0 %70
  %v73 = vlaneseq
  %v74 = vshrl.u32 %v73, 7
  %v75 = vsub.s32 2, %v74
  %v76 = vrot.slane %v16, %v75
  %v77 = vlaneseq
  %v78 = vshrl.u32 %v77, 7
  %v79 = vsub.s32 6, %v78
  %v80 = vrot.slane %v16, %v79
  %v83 = vlaneseq
  %v84 = vshrl.u32 %v83, 7
  %v85 = vsub.s32 2, %v84
  %v86 = vrot.slane %v76, %v85
  %v87 = vlaneseq
  %v88 = vshrl.u32 %v87, 7
  %v89 = vsub.s32 2, %v88
  %v90 = vrot.slane %v80, %v89
  %v91 = vmul.f32 %v71, %v86
  %v92 = vmul.f32 %v71, %v90
  %v93 = vadd.f32 %v67, %v91
  %v94 = vadd.f32 %v68, %v92
  %95 = vset.pattern.permute.xlu0 3
  %96 = vperm.xlu0 %95, %v14
  %v97 = vpop.permute.xlu0 %96
  %v99 = vlaneseq
  %v100 = vshrl.u32 %v99, 7
  %v101 = vsub.s32 3, %v100
  %v102 = vrot.slane %v16, %v101
  %v103 = vlaneseq
  %v104 = vshrl.u32 %v103, 7
  %v105 = vsub.s32 7, %v104
  %v106 = vrot.slane %v16, %v105
  %v109 = vlaneseq
  %v110 = vshrl.u32 %v109, 7
  %v111 = vsub.s32 3, %v110
  %v112 = vrot.slane %v102, %v111
  %v113 = vlaneseq
  %v114 = vshrl.u32 %v113, 7
  %v115 = vsub.s32 3, %v114
  %v116 = vrot.slane %v106, %v115
  %v117 = vmul.f32 %v97, %v112
  %v118 = vmul.f32 %v97, %v116
  %v119 = vadd.f32 %v93, %v117
  %v120 = vadd.f32 %v94, %v118
  %122 = vset.pattern.permute.xlu0 0
  %123 = vperm.xlu0 %122, %v15
  %v124 = vpop.permute.xlu0 %123
  %v126 = vadd.f32 %v119, %v124
  %v127 = vadd.f32 %v120, %v124
  %v128 = vmax.f32 %v126, 0.0
  %v129 = vmax.f32 %v127, 0.0
  %130 = vst [vmem:[%s3] sm:$0xff] %v128
  %131 = vst [vmem:[%s3 + $0x8] sm:$0xff] %v129
  %s132 = scalar_lea.vmem %s0, 8
  %v133 = vld [vmem:[%s132] sm:$0xff]
  %v135 = vlaneseq
  %v136 = vshrl.u32 %v135, 7
  %v137 = vsub.s32 0, %v136
  %v138 = vrot.slane %v133, %v137
  %v139 = vlaneseq
  %v140 = vshrl.u32 %v139, 7
  %v141 = vsub.s32 4, %v140
  %v142 = vrot.slane %v133, %v141
  %v145 = vlaneseq
  %v146 = vshrl.u32 %v145, 7
  %v147 = vsub.s32 0, %v146
  %v148 = vrot.slane %v138, %v147
  %v149 = vlaneseq
  %v150 = vshrl.u32 %v149, 7
  %v151 = vsub.s32 0, %v150
  %v152 = vrot.slane %v142, %v151
  %v153 = vmul.f32 %v20, %v148
  %v154 = vmul.f32 %v20, %v152
  %v155 = vlaneseq
  %v156 = vshrl.u32 %v155, 7
  %v157 = vsub.s32 1, %v156
  %v158 = vrot.slane %v133, %v157
  %v159 = vlaneseq
  %v160 = vshrl.u32 %v159, 7
  %v161 = vsub.s32 5, %v160
  %v162 = vrot.slane %v133, %v161
  %v165 = vlaneseq
  %v166 = vshrl.u32 %v165, 7
  %v167 = vsub.s32 1, %v166
  %v168 = vrot.slane %v158, %v167
  %v169 = vlaneseq
  %v170 = vshrl.u32 %v169, 7
  %v171 = vsub.s32 1, %v170
  %v172 = vrot.slane %v162, %v171
  %v173 = vmul.f32 %v45, %v168
  %v174 = vmul.f32 %v45, %v172
  %v175 = vadd.f32 %v153, %v173
  %v176 = vadd.f32 %v154, %v174
  %v177 = vlaneseq
  %v178 = vshrl.u32 %v177, 7
  %v179 = vsub.s32 2, %v178
  %v180 = vrot.slane %v133, %v179
  %v181 = vlaneseq
  %v182 = vshrl.u32 %v181, 7
  %v183 = vsub.s32 6, %v182
  %v184 = vrot.slane %v133, %v183
  %v187 = vlaneseq
  %v188 = vshrl.u32 %v187, 7
  %v189 = vsub.s32 2, %v188
  %v190 = vrot.slane %v180, %v189
  %v191 = vlaneseq
  %v192 = vshrl.u32 %v191, 7
  %v193 = vsub.s32 2, %v192
  %v194 = vrot.slane %v184, %v193
  %v195 = vmul.f32 %v71, %v190
  %v196 = vmul.f32 %v71, %v194
  %v197 = vadd.f32 %v175, %v195
  %v198 = vadd.f32 %v176, %v196
  %v199 = vlaneseq
  %v200 = vshrl.u32 %v199, 7
  %v201 = vsub.s32 3, %v200
  %v202 = vrot.slane %v133, %v201
  %v203 = vlaneseq
  %v204 = vshrl.u32 %v203, 7
  %v205 = vsub.s32 7, %v204
  %v206 = vrot.slane %v133, %v205
  %v209 = vlaneseq
  %v210 = vshrl.u32 %v209, 7
  %v211 = vsub.s32 3, %v210
  %v212 = vrot.slane %v202, %v211
  %v213 = vlaneseq
  %v214 = vshrl.u32 %v213, 7
  %v215 = vsub.s32 3, %v214
  %v216 = vrot.slane %v206, %v215
  %v217 = vmul.f32 %v97, %v212
  %v218 = vmul.f32 %v97, %v216
  %v219 = vadd.f32 %v197, %v217
  %v220 = vadd.f32 %v198, %v218
  %v221 = vadd.f32 %v219, %v124
  %v222 = vadd.f32 %v220, %v124
  %v223 = vmax.f32 %v221, 0.0
  %v224 = vmax.f32 %v222, 0.0
  %s225 = scalar_lea.vmem %s3, 16
  %226 = vst [vmem:[%s225] sm:$0xff] %v223
  %227 = vst [vmem:[%s225 + $0x8] sm:$0xff] %v224
  // Predicated region
  $region14: #{conv1x1_forward.1} parent=0 // pred_check
    _
  $region15: #{conv1x1_forward.1} parent=0 // pred_check_branch
    %229 = sbr.rel (0) target = $region17
  $region16: #{conv1x1_forward.1} parent=0 // pred_region
    _
  $region17: #{conv1x1_forward.1} parent=0 // pred_fallthru
    _
  // Predicated region
  $region18: #{conv1x1_forward.1} parent=0 // pred_check
    _
  $region19: #{conv1x1_forward.1} parent=0 // pred_check_branch
    %231 = sbr.rel (0) target = $region21
  $region20: #{conv1x1_forward.1} parent=0 // pred_region
    _
  $region21: #{conv1x1_forward.1} parent=0 // pred_fallthru
    _

</llo_original>
